<compile_context>
chip_gen: v5e
topology: v5e:2x2
jax: 0.10.0
libtpu: 0.0.40
codegen_flags: <defaults>
</compile_context>

<pallas_src>
import functools

import jax
import jax.numpy as jnp
from jax.experimental import pallas as pl
from jax.experimental.pallas import tpu as pltpu


def _dice_kernel(p_ref, t_ref, loss_ref, num_acc, den_acc, *, smooth, power):
    """Grid = (batch b, reduction k).

    Block shapes:
      p_ref/t_ref : (1, rows_tile, W)   rows_tile % 8 == 0, W % 128 == 0
      loss_ref    : (1, 8, 128)         per-batch loss broadcast (lane dense)
      num/den_acc : (rows_tile, W) f32  elementwise accumulators (VPU only)
    """
    k = pl.program_id(1)

    @pl.when(k == 0)
    def _init():
        num_acc[...] = jnp.zeros_like(num_acc)
        den_acc[...] = jnp.zeros_like(den_acc)

    p = p_ref[0].astype(jnp.float32)  # (rows_tile, W)
    t = t_ref[0].astype(jnp.float32)

    # Hot path: pure elementwise VPU work; all reductions deferred to finalize
    # so there is no per-step XLU reduce or masked narrow store.
    num_acc[...] += p * t
    if power == 2:                       # model's case: stay on VPU multiplies
        den_acc[...] += p * p + t * t
    elif power == 1:
        den_acc[...] += p + t
    else:
        den_acc[...] += p ** power + t ** power

    @pl.when(k == pl.num_programs(1) - 1)
    def _finalize():
        num = jnp.sum(num_acc[...]) + jnp.float32(smooth)
        den = jnp.sum(den_acc[...]) + jnp.float32(smooth)
        loss = 1.0 - num / den
        loss_ref[...] = (jnp.zeros(loss_ref.shape, jnp.float32) + loss).astype(
            loss_ref.dtype
        )


def _vmem_capacity_bytes():
    try:
        info = pltpu.get_tpu_info()
        cap = getattr(info, "vmem_capacity_bytes", None)
        if cap:
            return int(cap)
    except Exception:
        pass
    return 64 * 1024 * 1024  # conservative default (v7x per-TC VMEM)


def binary_dice_loss(predict, target, smooth=1, p=2, reduction="mean"):
    assert predict.shape[0] == target.shape[0], "predict & target batch size don't match"
    n = predict.shape[0]
    predict2d = predict.reshape(n, -1)
    target2d = target.reshape(n, -1)
    d = predict2d.shape[1]

    # Keep the exponent a compile-time Python int when possible: integer pow
    # stays as cheap VPU multiplies, a float exponent lowers to exp/log (EUP).
    power = int(p) if float(p) == int(p) else p

    # ---- Tile geometry ------------------------------------------------------
    LANE = 128
    W = 512 if d >= 8 * 512 else LANE  # lane width of the (R, W) row view

    p_bytes = predict2d.dtype.itemsize
    t_bytes = target2d.dtype.itemsize

    vmem_cap = _vmem_capacity_bytes()
    budget = int(vmem_cap * 0.6)  # leave headroom below physical VMEM
    # double-buffered inputs + two f32 elementwise accumulators, per block elem
    per_elem = 2 * (p_bytes + t_bytes) + 2 * 4
    max_block_elems = max(8 * W, budget // per_elem)
    max_block_elems = min(max_block_elems, 4 * 1024 * 1024)  # ~16 MiB f32 / input

    rows_needed = pl.cdiv(d, W)
    rows_needed = pl.cdiv(rows_needed, 8) * 8
    rows_tile = max(8, ((max_block_elems // W) // 8) * 8)
    rows_tile = min(rows_tile, rows_needed)

    chunk = rows_tile * W
    d_pad = pl.cdiv(d, chunk) * chunk
    if d_pad != d:
        # Zero padding is exact here (contributes 0 to num and den for p > 0).
        pad = d_pad - d
        predict2d = jnp.pad(predict2d, ((0, 0), (0, pad)))
        target2d = jnp.pad(target2d, ((0, 0), (0, pad)))

    R = d_pad // W
    grid_k = R // rows_tile

    predict3d = predict2d.reshape(n, R, W)
    target3d = target2d.reshape(n, R, W)

    # Scoped-VMEM limit sized per generation (64 MiB on v7x, 128 MiB v5e/v6e).
    in_buf_bytes = 2 * rows_tile * W * (p_bytes + t_bytes)
    acc_bytes = 2 * rows_tile * W * 4
    vmem_limit = in_buf_bytes + acc_bytes + (8 << 20)
    vmem_limit = int(min(max(vmem_limit, 16 << 20), vmem_cap - (2 << 20)))

    kernel = functools.partial(_dice_kernel, smooth=smooth, power=power)

    out = pl.pallas_call(
        kernel,
        out_shape=jax.ShapeDtypeStruct((n, 8, LANE), jnp.float32),
        grid_spec=pltpu.PrefetchScalarGridSpec(
            num_scalar_prefetch=0,
            grid=(n, grid_k),
            in_specs=[
                pl.BlockSpec((1, rows_tile, W), lambda b, k: (b, k, 0)),
                pl.BlockSpec((1, rows_tile, W), lambda b, k: (b, k, 0)),
            ],
            out_specs=pl.BlockSpec((1, 8, LANE), lambda b, k: (b, 0, 0)),
            scratch_shapes=[
                pltpu.VMEM((rows_tile, W), jnp.float32),
                pltpu.VMEM((rows_tile, W), jnp.float32),
            ],
        ),
        compiler_params=pltpu.CompilerParams(
            dimension_semantics=("parallel", "arbitrary"),
            vmem_limit_bytes=vmem_limit,
        ),
    )(predict3d, target3d)

    loss = out[:, 0, 0]  # (N,)
    if reduction == "mean":
        return jnp.mean(loss)
    elif reduction == "sum":
        return jnp.sum(loss)
    elif reduction == "none":
        return loss
    else:
        raise Exception("Unexpected reduction {}".format(reduction))


if __name__ == "__main__":
    key = jax.random.PRNGKey(0)
    k1, k2 = jax.random.split(key)
    # Small shapes consistent with a segmentation head: NCHW = (2, 4, 16, 16).
    predict = jax.nn.sigmoid(jax.random.normal(k1, (2, 4, 16, 16), jnp.float32))
    target = (jax.random.uniform(k2, (2, 4, 16, 16)) > 0.5).astype(jnp.float32)

    out = binary_dice_loss(predict, target, smooth=1, p=2, reduction="mean")
    out = jax.block_until_ready(out)

    # Pure-JAX reference check.
    pr = predict.reshape(2, -1)
    tr = target.reshape(2, -1)
    num = jnp.sum(pr * tr, axis=1) + 1.0
    den = jnp.sum(pr ** 2 + tr ** 2, axis=1) + 1.0
    ref = jnp.mean(1.0 - num / den)
    assert jnp.allclose(out, ref, rtol=1e-5, atol=1e-5), (out, ref)

    print("KERNEL_OK")
</pallas_src>

<mosaic_0001>
module attributes {stable_mosaic.version = 11 : i64} {
  func.func @_dice_kernel(%arg0: i32, %arg1: i32, %arg2: memref<1x8x128xf32, #tpu.memory_space<vmem>>, %arg3: memref<1x8x128xf32, #tpu.memory_space<vmem>>, %arg4: memref<1x8x128xf32, #tpu.memory_space<vmem>>, %arg5: memref<8x128xf32, #tpu.memory_space<vmem>>, %arg6: memref<8x128xf32, #tpu.memory_space<vmem>>) attributes {dimension_semantics = [#tpu.dimension_semantics<parallel>, #tpu.dimension_semantics<arbitrary>], iteration_bounds = array<i64: 2, 1>, scalar_prefetch = 0 : i64, scratch_operands = 2 : i64, tpu.core_type = #tpu.core_type<tc>, window_params = [{transform_indices = @transform_0, window_bounds = array<i64: 1, 8, 128>}, {transform_indices = @transform_1, window_bounds = array<i64: 1, 8, 128>}, {transform_indices = @transform_2, window_bounds = array<i64: 1, 8, 128>}]} {
    %c0_i32 = arith.constant 0 : i32
    %0 = arith.cmpi eq, %arg1, %c0_i32 : i32
    %1 = arith.extui %0 : i1 to i32
    %c0_i32_0 = arith.constant 0 : i32
    %2 = arith.cmpi ne, %1, %c0_i32_0 : i32
    scf.if %2 {
      %cst = arith.constant 0.000000e+00 : f32
      %20 = vector.broadcast %cst : f32 to vector<8x128xf32>
      %c0_16 = arith.constant 0 : index
      %c0_17 = arith.constant 0 : index
      %21 = vector.load %arg5[%c0_16, %c0_17] : memref<8x128xf32, #tpu.memory_space<vmem>>, vector<8x128xf32>
      tpu.vector_store %arg5[%c0_16, %c0_17], %20 {strides = array<i32>} : memref<8x128xf32, #tpu.memory_space<vmem>>, vector<8x128xf32>,
      %cst_18 = arith.constant 0.000000e+00 : f32
      %22 = vector.broadcast %cst_18 : f32 to vector<8x128xf32>
      %c0_19 = arith.constant 0 : index
      %c0_20 = arith.constant 0 : index
      %23 = vector.load %arg6[%c0_19, %c0_20] : memref<8x128xf32, #tpu.memory_space<vmem>>, vector<8x128xf32>
      tpu.vector_store %arg6[%c0_19, %c0_20], %22 {strides = array<i32>} : memref<8x128xf32, #tpu.memory_space<vmem>>, vector<8x128xf32>,
    } else {
    }
    %c0 = arith.constant 0 : index
    %c0_1 = arith.constant 0 : index
    %c0_2 = arith.constant 0 : index
    %3 = vector.load %arg2[%c0, %c0_1, %c0_2] : memref<1x8x128xf32, #tpu.memory_space<vmem>>, vector<1x8x128xf32>
    %4 = vector.shape_cast %3 : vector<1x8x128xf32> to vector<8x128xf32>
    %c0_3 = arith.constant 0 : index
    %c0_4 = arith.constant 0 : index
    %c0_5 = arith.constant 0 : index
    %5 = vector.load %arg3[%c0_3, %c0_4, %c0_5] : memref<1x8x128xf32, #tpu.memory_space<vmem>>, vector<1x8x128xf32>
    %6 = vector.shape_cast %5 : vector<1x8x128xf32> to vector<8x128xf32>
    %c0_6 = arith.constant 0 : index
    %c0_7 = arith.constant 0 : index
    %7 = vector.load %arg5[%c0_6, %c0_7] : memref<8x128xf32, #tpu.memory_space<vmem>>, vector<8x128xf32>
    %8 = arith.mulf %4, %6 : vector<8x128xf32>
    %9 = arith.addf %7, %8 : vector<8x128xf32>
    %c0_8 = arith.constant 0 : index
    %c0_9 = arith.constant 0 : index
    %10 = vector.load %arg5[%c0_8, %c0_9] : memref<8x128xf32, #tpu.memory_space<vmem>>, vector<8x128xf32>
    tpu.vector_store %arg5[%c0_8, %c0_9], %9 {strides = array<i32>} : memref<8x128xf32, #tpu.memory_space<vmem>>, vector<8x128xf32>,
    %c0_10 = arith.constant 0 : index
    %c0_11 = arith.constant 0 : index
    %11 = vector.load %arg6[%c0_10, %c0_11] : memref<8x128xf32, #tpu.memory_space<vmem>>, vector<8x128xf32>
    %12 = arith.mulf %4, %4 : vector<8x128xf32>
    %13 = arith.mulf %6, %6 : vector<8x128xf32>
    %14 = arith.addf %12, %13 : vector<8x128xf32>
    %15 = arith.addf %11, %14 : vector<8x128xf32>
    %c0_12 = arith.constant 0 : index
    %c0_13 = arith.constant 0 : index
    %16 = vector.load %arg6[%c0_12, %c0_13] : memref<8x128xf32, #tpu.memory_space<vmem>>, vector<8x128xf32>
    tpu.vector_store %arg6[%c0_12, %c0_13], %15 {strides = array<i32>} : memref<8x128xf32, #tpu.memory_space<vmem>>, vector<8x128xf32>,
    %c0_i32_14 = arith.constant 0 : i32
    %17 = arith.cmpi eq, %arg1, %c0_i32_14 : i32
    %18 = arith.extui %17 : i1 to i32
    %c0_i32_15 = arith.constant 0 : i32
    %19 = arith.cmpi ne, %18, %c0_i32_15 : i32
    scf.if %19 {
      %c0_16 = arith.constant 0 : index
      %c0_17 = arith.constant 0 : index
      %20 = vector.load %arg5[%c0_16, %c0_17] : memref<8x128xf32, #tpu.memory_space<vmem>>, vector<8x128xf32>
      %21 = vector.shape_cast %20 : vector<8x128xf32> to vector<1x8x128xf32>
      %cst = arith.constant dense<0.000000e+00> : vector<1xf32>
      %22 = vector.multi_reduction <add>, %21, %cst [1, 2] : vector<1x8x128xf32> to vector<1xf32>
      %23 = vector.shape_cast %22 : vector<1xf32> to vector<1x1x1xf32>
      %24 = vector.extract %23[0, 0, 0] : f32 from vector<1x1x1xf32>
      %cst_18 = arith.constant 1.000000e+00 : f32
      %25 = arith.addf %24, %cst_18 : f32
      %c0_19 = arith.constant 0 : index
      %c0_20 = arith.constant 0 : index
      %26 = vector.load %arg6[%c0_19, %c0_20] : memref<8x128xf32, #tpu.memory_space<vmem>>, vector<8x128xf32>
      %27 = vector.shape_cast %26 : vector<8x128xf32> to vector<1x8x128xf32>
      %cst_21 = arith.constant dense<0.000000e+00> : vector<1xf32>
      %28 = vector.multi_reduction <add>, %27, %cst_21 [1, 2] : vector<1x8x128xf32> to vector<1xf32>
      %29 = vector.shape_cast %28 : vector<1xf32> to vector<1x1x1xf32>
      %30 = vector.extract %29[0, 0, 0] : f32 from vector<1x1x1xf32>
      %cst_22 = arith.constant 1.000000e+00 : f32
      %31 = arith.addf %30, %cst_22 : f32
      %32 = arith.divf %25, %31 : f32
      %cst_23 = arith.constant 1.000000e+00 : f32
      %33 = arith.subf %cst_23, %32 : f32
      %cst_24 = arith.constant 0.000000e+00 : f32
      %34 = vector.broadcast %cst_24 : f32 to vector<1x8x128xf32>
      %35 = vector.broadcast %33 : f32 to vector<1x8x128xf32>
      %36 = arith.addf %34, %35 : vector<1x8x128xf32>
      %c0_25 = arith.constant 0 : index
      %c0_26 = arith.constant 0 : index
      %c0_27 = arith.constant 0 : index
      %37 = vector.load %arg4[%c0_25, %c0_26, %c0_27] : memref<1x8x128xf32, #tpu.memory_space<vmem>>, vector<1x8x128xf32>
      tpu.vector_store %arg4[%c0_25, %c0_26, %c0_27], %36 {strides = array<i32>} : memref<1x8x128xf32, #tpu.memory_space<vmem>>, vector<1x8x128xf32>,
    } else {
    }
    return
  }
  func.func @transform_0(%arg0: i32, %arg1: i32) -> (i32, i32, i32) {
    %c0_i32 = arith.constant 0 : i32
    %c0_i32_0 = arith.constant 0 : i32
    return %arg0, %arg1, %c0_i32 : i32, i32, i32
  }
  func.func @transform_1(%arg0: i32, %arg1: i32) -> (i32, i32, i32) {
    %c0_i32 = arith.constant 0 : i32
    %c0_i32_0 = arith.constant 0 : i32
    return %arg0, %arg1, %c0_i32 : i32, i32, i32
  }
  func.func @transform_2(%arg0: i32, %arg1: i32) -> (i32, i32, i32) {
    %c0_i32 = arith.constant 0 : i32
    %c0_i32_0 = arith.constant 0 : i32
    %c0_i32_1 = arith.constant 0 : i32
    return %arg0, %c0_i32, %c0_i32_0 : i32, i32, i32
  }
}

</mosaic_0001>

<llo_original>
// kernel: tpu_custom_call.1
$region0: #{tpu_custom_call.1}
  #allocation0 [shape = 'u32[]', space=smem, size = 0x4, offset = 0x4, fixed_abs, tag = 'smem constant byte address 0x4 - core index']
  #allocation1 [shape = 'u32[72,128]{1,0:T(1,128)}', space=vmem, size = 0x9000, scoped, tag = 'internal scratch']
  #allocation2 [shape = 'f32[8,128]{1,0:T(8,128)}', space=vmem, size = 0x1000, scoped, tag = 'scratch operand']
  #allocation3 [shape = 'f32[8,128]{1,0:T(8,128)}', space=vmem, size = 0x1000, scoped, tag = 'scratch operand']
  %s0 = inlined_call_operand.hbm [shape: f32[2,8,128], index: 0, kind: input, shape index: {}]
  %s1 = inlined_call_operand.hbm [shape: f32[2,8,128], index: 1, kind: input, shape index: {}]
  %s2 = inlined_call_operand.hbm [shape: f32[2,8,128], index: 2, kind: output, shape index: {}]
  %s3 = sld [smem:[#allocation0]]
  $region57: #{tpu_custom_call.1} parent=0
    _
  %s5 = ssub.s32 1, %s3
  %s6 = scalar_select 0, %s5, %s3
  $region1: #{tpu_custom_call.1} parent=0
    #allocation4 [shape = 'u8[8192]{0}', space=vmem, size = 0x2000, scoped, tag = 'input window, operand 0']
    #allocation5 [shape = 's32[2]{0}', space=sflag, size = 0x8, scoped, tag = 'scoped memory for tpu_custom_call.1']
    #allocation6 [shape = 's32[2]{0}', space=sflag, size = 0x8, scoped, tag = 'scoped memory for tpu_custom_call.1']
    #allocation7 [shape = 'u8[8192]{0}', space=vmem, size = 0x2000, scoped, tag = 'input window, operand 1']
    #allocation8 [shape = 's32[2]{0}', space=sflag, size = 0x8, scoped, tag = 'scoped memory for tpu_custom_call.1']
    #allocation9 [shape = 'u8[8192]{0}', space=vmem, size = 0x2000, scoped, tag = 'output window, operand 0']
    %7 = vsyncpa [#allocation5], 0
    %s8 = scalar_lea.sflag [#allocation5], 1
    %9 = vsyncpa %s8, 0
    %10 = vsyncpa [#allocation8], 0
    %s11 = scalar_lea.sflag [#allocation8], 1
    %12 = vsyncpa %s11, 0
    %13 = vsyncpa [#allocation6], 0
    %s14 = scalar_lea.sflag [#allocation6], 1
    %15 = vsyncpa %s14, 0
    loop: start=0, step=1, limit=4
    $region2: #{tpu_custom_call.1} parent=1 // loop_pre_header
      _
    $region3: #{tpu_custom_call.1} parent=1 // loop_header
      %s17 = sphi 0, %s21
      %p18 = scmp.ge.s32.totalorder %s17, 4
      %s24 = sphi 0, %s36
      %s25 = sphi 0, %s32
      %s26 = sphi 0, %s24
      %s27 = sphi 0, %s25
      %s28 = sphi 0, %s26
      %s29 = sphi 0, %s27
      %s41 = sphi 0, %s43
      %s44 = sphi 0, %s41
      %s45 = sphi 0, %s44
      %s61 = sphi 0, %s45
      %s69 = sphi 0, %s71
      %s72 = sphi 0, %s69
      %s73 = sphi 0, %s72
      %s89 = sphi 0, %s73
      %s95 = sphi 0, %s97
      %s98 = sphi 0, %s95
      %s99 = sphi 0, %s98
      %s115 = sphi 0, %s99
    $region4: #{tpu_custom_call.1} parent=1 // loop_header_branch
      %20 = sbr.rel (%p18) target = $region8
    $region5: #{tpu_custom_call.1} parent=1 // loop_body
      %s22 = ssub.s32 %s17, 1
      %s23 = ssub.s32 %s17, 2
      %s30 = sadd.s32 1, %s25
      %p31 = scmp.ge.s32.totalorder %s30, 1
      %s32 = scalar_select %p31, 0, %s30
      %s33 = sadd.s32 1, %s24
      %s34 = scalar_select %p31, %s33, %s24
      %p35 = scmp.ge.s32.totalorder %s34, 2
      %s36 = scalar_select %p35, 0, %s34
      %s37 = ssub.s32 %s24, %s36
      %s38 = ssub.s32 %s25, %s32
      %s39 = sor.u32 %s37, %s38
      %p40 = scmp.eq.s32.totalorder %s39, 0
      %s42 = sadd.s32 %s41, 1
      %s43 = scalar_select %p40, %s41, %s42
      %p46 = pneg %p40
      %p47 = scmp.eq.s32.totalorder %s17, 1
      %p48 = por %p46, %p47
      %p49 = scmp.ne.s32.totalorder %s41, %s44
      %p50 = scmp.eq.s32.totalorder %s17, 0
      %p51 = por %p49, %p50
      %p52 = scmp.ne.s32.totalorder %s41, %s44
      %p53 = scmp.eq.s32.totalorder %s22, 1
      %p54 = por %p52, %p53
      %p55 = scmp.ne.s32.totalorder %s44, %s45
      %p56 = scmp.eq.s32.totalorder %s22, 0
      %p57 = por %p55, %p56
      %p58 = scmp.ne.s32.totalorder %s44, %s45
      %p59 = scmp.eq.s32.totalorder %s23, 1
      %p60 = por %p58, %p59
      %p62 = scmp.ne.s32.totalorder %s45, %s61
      %p63 = scmp.eq.s32.totalorder %s23, 0
      %p64 = por %p62, %p63
      %s65 = ssub.s32 %s24, %s36
      %s66 = ssub.s32 %s25, %s32
      %s67 = sor.u32 %s65, %s66
      %p68 = scmp.eq.s32.totalorder %s67, 0
      %s70 = sadd.s32 %s69, 1
      %s71 = scalar_select %p68, %s69, %s70
      %p74 = pneg %p68
      %p75 = scmp.eq.s32.totalorder %s17, 1
      %p76 = por %p74, %p75
      %p77 = scmp.ne.s32.totalorder %s69, %s72
      %p78 = scmp.eq.s32.totalorder %s17, 0
      %p79 = por %p77, %p78
      %p80 = scmp.ne.s32.totalorder %s69, %s72
      %p81 = scmp.eq.s32.totalorder %s22, 1
      %p82 = por %p80, %p81
      %p83 = scmp.ne.s32.totalorder %s72, %s73
      %p84 = scmp.eq.s32.totalorder %s22, 0
      %p85 = por %p83, %p84
      %p86 = scmp.ne.s32.totalorder %s72, %s73
      %p87 = scmp.eq.s32.totalorder %s23, 1
      %p88 = por %p86, %p87
      %p90 = scmp.ne.s32.totalorder %s73, %s89
      %p91 = scmp.eq.s32.totalorder %s23, 0
      %p92 = por %p90, %p91
      %s93 = ssub.s32 %s24, %s36
      %p94 = scmp.eq.s32.totalorder %s93, 0
      %s96 = sadd.s32 %s95, 1
      %s97 = scalar_select %p94, %s95, %s96
      %p100 = pneg %p94
      %p101 = scmp.eq.s32.totalorder %s17, 1
      %p102 = por %p100, %p101
      %p103 = scmp.ne.s32.totalorder %s95, %s98
      %p104 = scmp.eq.s32.totalorder %s17, 0
      %p105 = por %p103, %p104
      %p106 = scmp.ne.s32.totalorder %s95, %s98
      %p107 = scmp.eq.s32.totalorder %s22, 1
      %p108 = por %p106, %p107
      %p109 = scmp.ne.s32.totalorder %s98, %s99
      %p110 = scmp.eq.s32.totalorder %s22, 0
      %p111 = por %p109, %p110
      %p112 = scmp.ne.s32.totalorder %s98, %s99
      %p113 = scmp.eq.s32.totalorder %s23, 1
      %p114 = por %p112, %p113
      %p116 = scmp.ne.s32.totalorder %s99, %s115
      %p117 = scmp.eq.s32.totalorder %s23, 0
      %p118 = por %p116, %p117
      %p119 = scmp.le.s32.totalorder 1, %s17
      %p120 = scmp.lt.s32.totalorder %s17, 3
      %p121 = pnand %p119, %p120
      %p122 = pneg %p121
      // Predicated region
      $region9: #{tpu_custom_call.1} parent=5 // pred_check
        _
      $region10: #{tpu_custom_call.1} parent=5 // pred_check_branch
        %124 = sbr.rel (%p121) target = $region12
      $region11: #{tpu_custom_call.1} parent=5 // pred_region
        %s125 = ssub.s32 %s17, 1
      $region12: #{tpu_custom_call.1} parent=5 // pred_fallthru
        _
      %p126 = scmp.lt.s32.totalorder %s17, 2
      // Predicated region
      $region13: #{tpu_custom_call.1} parent=5 // pred_check
        %p127 = pneg %p126
      $region14: #{tpu_custom_call.1} parent=5 // pred_check_branch
        %129 = sbr.rel (%p127) target = $region16
      $region15: #{tpu_custom_call.1} parent=5 // pred_region
        // Predicated region
        $region17: #{tpu_custom_call.1} parent=15 // pred_check
          %p130 = pneg %p51
        $region18: #{tpu_custom_call.1} parent=15 // pred_check_branch
          %132 = sbr.rel (%p130) target = $region20
        $region19: #{tpu_custom_call.1} parent=15 // pred_region
          %s133 = sand.u32 %s41, 1
          %s134 = scalar_lea.sflag [#allocation5], %s133
          %s135 = sand.u32 %s41, 1
          %s136 = smul.addr %s135, 8
          %s137 = scalar_lea.vmem [#allocation4], %s136
          %139 = vsyncadd %s134, 0
          %s140 = sadd.s32 %s25, %s24
          %s141 = smul.addr %s140, 8
          %s142 = scalar_lea.hbm %s0, %s141
          %s144 = sshll.u32 %s142, 4
          %s145 = int_to_ptr.hbm [resolvable:$true] %s144
          %s146 = sshll.u32 %s137, 4
          %s147 = int_to_ptr.vmem [resolvable:$true] %s146
          %149 = dma.hbm_to_vmem [thread:$0]  %s145, 128, %s147, %s134
        $region20: #{tpu_custom_call.1} parent=15 // pred_fallthru
          _
        // Predicated region
        $region21: #{tpu_custom_call.1} parent=15 // pred_check
          %p150 = pneg %p79
        $region22: #{tpu_custom_call.1} parent=15 // pred_check_branch
          %152 = sbr.rel (%p150) target = $region24
        $region23: #{tpu_custom_call.1} parent=15 // pred_region
          %s153 = sand.u32 %s69, 1
          %s154 = scalar_lea.sflag [#allocation8], %s153
          %s155 = sand.u32 %s69, 1
          %s156 = smul.addr %s155, 8
          %s157 = scalar_lea.vmem [#allocation7], %s156
          %159 = vsyncadd %s154, 0
          %s160 = sadd.s32 %s25, %s24
          %s161 = smul.addr %s160, 8
          %s162 = scalar_lea.hbm %s1, %s161
          %s164 = sshll.u32 %s162, 4
          %s165 = int_to_ptr.hbm [resolvable:$true] %s164
          %s166 = sshll.u32 %s157, 4
          %s167 = int_to_ptr.vmem [resolvable:$true] %s166
          %169 = dma.hbm_to_vmem [thread:$0]  %s165, 128, %s167, %s154
        $region24: #{tpu_custom_call.1} parent=15 // pred_fallthru
          _
      $region16: #{tpu_custom_call.1} parent=5 // pred_fallthru
        _
      %p170 = scmp.le.s32.totalorder 1, %s17
      %p171 = scmp.lt.s32.totalorder %s17, 3
      %p172 = pnand %p170, %p171
      %p173 = pneg %p172
      // Predicated region
      $region25: #{tpu_custom_call.1} parent=5 // pred_check
        _
      $region26: #{tpu_custom_call.1} parent=5 // pred_check_branch
        %175 = sbr.rel (%p172) target = $region28
      $region27: #{tpu_custom_call.1} parent=5 // pred_region
        %s176 = ssub.s32 %s17, 1
        %s177 = sand.u32 %s44, 1
        %s178 = scalar_lea.sflag [#allocation5], %s177
        %s179 = sand.u32 %s44, 1
        %s180 = smul.addr %s179, 8
        %s181 = scalar_lea.vmem [#allocation4], %s180
        // Predicated region
        $region29: #{tpu_custom_call.1} parent=27 // pred_check
          %p182 = pneg %p57
        $region30: #{tpu_custom_call.1} parent=27 // pred_check_branch
          %184 = sbr.rel (%p182) target = $region32
        $region31: #{tpu_custom_call.1} parent=27 // pred_region
          %186 = dma.done %s178, 128
        $region32: #{tpu_custom_call.1} parent=27 // pred_fallthru
          _
        %s187 = sand.u32 %s72, 1
        %s188 = scalar_lea.sflag [#allocation8], %s187
        %s189 = sand.u32 %s72, 1
        %s190 = smul.addr %s189, 8
        %s191 = scalar_lea.vmem [#allocation7], %s190
        // Predicated region
        $region33: #{tpu_custom_call.1} parent=27 // pred_check
          %p192 = pneg %p85
        $region34: #{tpu_custom_call.1} parent=27 // pred_check_branch
          %194 = sbr.rel (%p192) target = $region36
        $region35: #{tpu_custom_call.1} parent=27 // pred_region
          %196 = dma.done %s188, 128
        $region36: #{tpu_custom_call.1} parent=27 // pred_fallthru
          _
        %s197 = sand.u32 %s44, 1
        %s198 = scalar_lea.sflag [#allocation5], %s197
        %s199 = sand.u32 %s44, 1
        %s200 = smul.addr %s199, 8
        %s201 = scalar_lea.vmem [#allocation4], %s200
        %p202 = pneg %p57
        %p203 = pneg %p54
        %s204 = sand.u32 %s72, 1
        %s205 = scalar_lea.sflag [#allocation8], %s204
        %s206 = sand.u32 %s72, 1
        %s207 = smul.addr %s206, 8
        %s208 = scalar_lea.vmem [#allocation7], %s207
        %p209 = pneg %p85
        %p210 = pneg %p82
        %p211 = pneg %p111
        %p212 = pneg %p108
        %s213 = sand.u32 %s98, 1
        %s214 = scalar_lea.sflag [#allocation6], %s213
        %s215 = sand.u32 %s98, 1
        %s216 = smul.addr %s215, 8
        %s217 = scalar_lea.vmem [#allocation9], %s216
        %p218 = scmp.eq.s32.totalorder %s27, 0
        // Predicated region
        $region37: #{tpu_custom_call.1} parent=27 // pred_check
          %p219 = pneg %p218
        $region38: #{tpu_custom_call.1} parent=27 // pred_check_branch
          %221 = sbr.rel (%p219) target = $region40
        $region39: #{tpu_custom_call.1} parent=27 // pred_region
          %222 = vst [vmem:[#allocation2] sm:$0xff] 0.0
          %223 = vst [vmem:[#allocation3] sm:$0xff] 0.0
        $region40: #{tpu_custom_call.1} parent=27 // pred_fallthru
          _
        %v224 = vld [vmem:[%s181] sm:$0xff]
        %v225 = vld [vmem:[%s191] sm:$0xff]
        %v226 = vld [vmem:[#allocation2] sm:$0xff]
        %v227 = vmul.f32 %v224, %v225
        %v228 = vadd.f32 %v226, %v227
        %229 = vst [vmem:[#allocation2] sm:$0xff] %v228
        %v230 = vld [vmem:[#allocation3] sm:$0xff]
        %v231 = vmul.f32 %v224, %v224
        %v232 = vmul.f32 %v225, %v225
        %v233 = vadd.f32 %v231, %v232
        %v234 = vadd.f32 %v230, %v233
        %235 = vst [vmem:[#allocation3] sm:$0xff] %v234
        // Predicated region
        $region41: #{tpu_custom_call.1} parent=27 // pred_check
          %p236 = pneg %p218
        $region42: #{tpu_custom_call.1} parent=27 // pred_check_branch
          %238 = sbr.rel (%p236) target = $region44
        $region43: #{tpu_custom_call.1} parent=27 // pred_region
          %v239 = vld [vmem:[#allocation2] sm:$0xff]
          %240 = vadd.xlane.f32.xlu0 %v239
          %v241 = vpop.xlane.xlu0 %240
          %v242 = vrot.slane %v241, 4
          %v243 = vadd.f32 %v241, %v242
          %v244 = vrot.slane %v243, 2
          %v245 = vadd.f32 %v243, %v244
          %v246 = vrot.slane %v245, 1
          %v247 = vadd.f32 %v245, %v246
          %s248 = vtos %v247
          %s249 = sadd.f32 %s248, 1.0
          %v250 = vld [vmem:[#allocation3] sm:$0xff]
          %251 = vadd.xlane.f32.xlu0 %v250
          %v252 = vpop.xlane.xlu0 %251
          %v253 = vrot.slane %v252, 4
          %v254 = vadd.f32 %v252, %v253
          %v255 = vrot.slane %v254, 2
          %v256 = vadd.f32 %v254, %v255
          %v257 = vrot.slane %v256, 1
          %v258 = vadd.f32 %v256, %v257
          %s259 = vtos %v258
          %s260 = sadd.f32 %s259, 1.0
          %v261 = vstv %s260
          %v262 = vrcp.pop %v261
          %v263 = vmul.f32 %v261, %v262
          %v264 = vsub.f32 1.0, %v263
          %v265 = vmul.f32 %v262, %v264
          %v266 = vadd.f32 %v262, %v265
          %vm267 = vweird.f32 %v261
          %vm268 = vweird.f32 %v262
          %vm269 = vmor %vm267, %vm268
          %v270 = vsel %vm269, %v262, %v266
          %v271 = vand.u32 2147483647, %v261
          %vm272 = vcmp.eq.f32.partialorder %v271, 8.507059e+37
          %v273 = vand.u32 %v261, 2147483648
          %v274 = vor.u32 1.1754944e-38, %v273
          %v275 = vsel %vm272, %v274, %v270
          %s276 = vtos %v275
          %s277 = smul.f32 %s249, %s276
          %s278 = ssub.f32 1.0, %s277
          %v279 = vstv %s278
          %v280 = vadd.f32 %v279, 0.0
          %281 = vst [vmem:[%s217] sm:$0xff] %v280
        $region44: #{tpu_custom_call.1} parent=27 // pred_fallthru
          _
        %s282 = sand.u32 %s98, 1
        %s283 = scalar_lea.sflag [#allocation6], %s282
        %s284 = sand.u32 %s98, 1
        %s285 = smul.addr %s284, 8
        %s286 = scalar_lea.vmem [#allocation9], %s285
        // Predicated region
        $region45: #{tpu_custom_call.1} parent=27 // pred_check
          %p287 = pneg %p108
        $region46: #{tpu_custom_call.1} parent=27 // pred_check_branch
          %289 = sbr.rel (%p287) target = $region48
        $region47: #{tpu_custom_call.1} parent=27 // pred_region
          %291 = vsyncadd %s283, 0
          %s292 = smul.addr %s26, 8
          %s293 = scalar_lea.hbm %s2, %s292
          %s295 = sshll.u32 %s286, 4
          %s296 = int_to_ptr.vmem [resolvable:$true] %s295
          %s297 = sshll.u32 %s293, 4
          %s298 = int_to_ptr.hbm [resolvable:$true] %s297
          %300 = dma.vmem_to_hbm [thread:$0]  %s296, 128, %s298, %s283
        $region48: #{tpu_custom_call.1} parent=27 // pred_fallthru
          _
      $region28: #{tpu_custom_call.1} parent=5 // pred_fallthru
        _
      %p301 = scmp.le.s32.totalorder 2, %s17
      // Predicated region
      $region49: #{tpu_custom_call.1} parent=5 // pred_check
        %p302 = pneg %p301
      $region50: #{tpu_custom_call.1} parent=5 // pred_check_branch
        %304 = sbr.rel (%p302) target = $region52
      $region51: #{tpu_custom_call.1} parent=5 // pred_region
        %s305 = ssub.s32 %s17, 2
        // Predicated region
        $region53: #{tpu_custom_call.1} parent=51 // pred_check
          %p306 = pneg %p114
        $region54: #{tpu_custom_call.1} parent=51 // pred_check_branch
          %308 = sbr.rel (%p306) target = $region56
        $region55: #{tpu_custom_call.1} parent=51 // pred_region
          %s309 = sand.u32 %s99, 1
          %s310 = scalar_lea.sflag [#allocation6], %s309
          %s311 = sand.u32 %s99, 1
          %s312 = smul.addr %s311, 8
          %s313 = scalar_lea.vmem [#allocation9], %s312
          %315 = dma.done %s310, 128
        $region56: #{tpu_custom_call.1} parent=51 // pred_fallthru
          _
      $region52: #{tpu_custom_call.1} parent=5 // pred_fallthru
        _
    $region6: #{tpu_custom_call.1} parent=1 // loop_footer
      %s21 = sadd.s32 1, %s17
    $region7: #{tpu_custom_call.1} parent=1 // loop_footer_branch
      %16 = sbr.rel target = $region3
    $region8: #{tpu_custom_call.1} parent=1 // loop_exit
      _
    %316 = vsyncpa [#allocation5], 1
    %s317 = scalar_lea.sflag [#allocation5], 1
    %318 = vsyncpa %s317, 1
    %319 = vsyncpa [#allocation8], 1
    %s320 = scalar_lea.sflag [#allocation8], 1
    %321 = vsyncpa %s320, 1
    %322 = vsyncpa [#allocation6], 1
    %s323 = scalar_lea.sflag [#allocation6], 1
    %324 = vsyncpa %s323, 1

</llo_original>
